<compile_context>
chip_gen: v7x
topology: tpu7x:2x2x1
jax: 0.10.0
libtpu: 0.0.40
codegen_flags: <defaults>
</compile_context>

<pallas_src>
import jax
import jax.numpy as jnp
from jax.experimental import pallas as pl
from jax.experimental.pallas import tpu as pltpu

_LANE = 128
_SUBLANE = 8


def _identity_copy_kernel(x_ref, o_ref):
    """feats tile <- backbone(x) tile (Identity backbone). Single store."""
    o_ref[...] = x_ref[...]


def _choose_2d_layout(n):
    """Pick (rows, cols) for a flat buffer of n elements.

    Prefers lane-dense cols (multiple of 128, up to 1024) with rows a multiple
    of 8 so vregs / stores are fully utilized (no masked vst.msk).
    """
    for cols in (1024, 512, 256, 128):
        if n % cols == 0 and (n // cols) % _SUBLANE == 0:
            return n // cols, cols
    for cols in (1024, 512, 256, 128):
        if n % cols == 0:
            return n // cols, cols
    return None


def _choose_row_tile(rows, cols, itemsize, max_block_bytes=4 << 20):
    """Largest multiple-of-8 divisor of rows whose block stays under
    max_block_bytes, keeping double-buffered VMEM far below v7x's 64 MiB."""
    if rows * cols * itemsize <= max_block_bytes:
        return rows
    cap = max(_SUBLANE,
              (max_block_bytes // (cols * itemsize)) // _SUBLANE * _SUBLANE)
    tr = cap
    while tr >= _SUBLANE:
        if rows % tr == 0:
            return tr
        tr -= _SUBLANE
    return rows


def dann_forward(x, source_size, alpha):
    """Mirrors DANNBaseNetwork.forward(x, source_size, alpha).

    Returns (feats, logits, dom):
      feats  : (B, F) flattened features (Identity backbone)
      logits : feats[:source_size] if source_size > 0 else None (Identity head)
      dom    : feats.squeeze()  (GradReverse fwd + Identity domain head = alias)
    `alpha` only scales the *backward* gradient; unused in the forward pass,
    exactly like the PyTorch module.
    """
    del alpha  # forward-only: alpha scales gradients, not activations

    B = x.shape[0]
    F = 1
    for d in x.shape[1:]:
        F *= d
    N = B * F
    itemsize = jnp.dtype(x.dtype).itemsize

    layout = _choose_2d_layout(N)
    if layout is None:
        # No clean lane-dense factorization: single whole-array block
        # (full-extent dims are exempt from the (8,128) divisibility rule).
        rows, cols = B, F
        tile_rows = rows
    else:
        rows, cols = layout
        tile_rows = _choose_row_tile(rows, cols, itemsize)

    # Glue: feats.view(B, -1), re-laid lane-dense for the kernel.
    x2d = x.reshape(rows, cols)
    grid = (rows // tile_rows,)

    feats2d = pl.pallas_call(
        _identity_copy_kernel,
        out_shape=jax.ShapeDtypeStruct((rows, cols), x.dtype),
        grid=grid,
        in_specs=[pl.BlockSpec((tile_rows, cols), lambda i: (i, 0))],
        out_specs=pl.BlockSpec((tile_rows, cols), lambda i: (i, 0)),
        # feats re-uses x2d's HBM buffer: 1 read + 1 in-place write, no new alloc.
        input_output_aliases={0: 0},
        compiler_params=pltpu.CompilerParams(
            dimension_semantics=("parallel",)),  # v7x: shard tiles over 2 TCs
        cost_estimate=pl.CostEstimate(
            flops=0, transcendentals=0, bytes_accessed=2 * N * itemsize),
    )(x2d)

    feats = feats2d.reshape(B, F)

    # Glue: classifier (Identity) on the first source_size rows -> cheap XLA slice.
    logits = feats[:source_size] if source_size > 0 else None

    # Glue: GradReverse.forward == view_as (identity); domain_classifier == Identity.
    # dom is a pure alias of feats (no extra HBM write); .squeeze() matches PyTorch.
    dom = jnp.squeeze(feats)

    return feats, logits, dom


if __name__ == "__main__":
    key = jax.random.PRNGKey(0)
    # Small NCHW input consistent with a conv-style backbone feed.
    B, C, H, W = 2, 4, 16, 16
    x = jax.random.normal(key, (B, C, H, W), dtype=jnp.float32)

    source_size = 1
    alpha = 0.5

    feats, logits, dom = dann_forward(x, source_size, alpha)
    feats = jax.block_until_ready(feats)
    logits = jax.block_until_ready(logits)
    dom = jax.block_until_ready(dom)

    # Correctness checks against the pure-JAX reference semantics.
    ref_feats = x.reshape(B, -1)
    assert feats.shape == (B, C * H * W)
    assert jnp.allclose(feats, ref_feats)
    assert logits.shape == (source_size, C * H * W)
    assert jnp.allclose(logits, ref_feats[:source_size])
    assert dom.shape == (B, C * H * W)
    assert jnp.allclose(dom, ref_feats)

    # Also exercise the source_size == 0 branch (logits is None).
    feats0, logits0, dom0 = dann_forward(x, 0, alpha)
    jax.block_until_ready(feats0)
    assert logits0 is None
    assert jnp.allclose(feats0, ref_feats)

    print("KERNEL_OK")
</pallas_src>

<mosaic_0001>
module attributes {stable_mosaic.version = 11 : i64} {
  func.func @_identity_copy_kernel(%arg0: i32, %arg1: memref<8x256xf32, #tpu.memory_space<vmem>>, %arg2: memref<8x256xf32, #tpu.memory_space<vmem>>) attributes {dimension_semantics = [#tpu.dimension_semantics<parallel>], iteration_bounds = array<i64: 1>, scalar_prefetch = 0 : i64, scratch_operands = 0 : i64, tpu.core_type = #tpu.core_type<tc>, window_params = [{transform_indices = @transform_0, window_bounds = array<i64: 8, 256>}, {transform_indices = @transform_1, window_bounds = array<i64: 8, 256>}]} {
    %c0 = arith.constant 0 : index
    %c0_0 = arith.constant 0 : index
    %0 = vector.load %arg1[%c0, %c0_0] : memref<8x256xf32, #tpu.memory_space<vmem>>, vector<8x256xf32>
    %c0_1 = arith.constant 0 : index
    %c0_2 = arith.constant 0 : index
    %1 = vector.load %arg2[%c0_1, %c0_2] : memref<8x256xf32, #tpu.memory_space<vmem>>, vector<8x256xf32>
    tpu.vector_store %arg2[%c0_1, %c0_2], %0 {strides = array<i32>} : memref<8x256xf32, #tpu.memory_space<vmem>>, vector<8x256xf32>,
    return
  }
  func.func @transform_0(%arg0: i32) -> (i32, i32) {
    %c0_i32 = arith.constant 0 : i32
    %c0_i32_0 = arith.constant 0 : i32
    return %arg0, %c0_i32 : i32, i32
  }
  func.func @transform_1(%arg0: i32) -> (i32, i32) {
    %c0_i32 = arith.constant 0 : i32
    %c0_i32_0 = arith.constant 0 : i32
    return %arg0, %c0_i32 : i32, i32
  }
}

</mosaic_0001>

<llo_original>
// kernel: tpu_custom_call.1
$region0: #{tpu_custom_call.1}
  #allocation0 [shape = 'u32[]', space=smem, size = 0x4, offset = 0x4, fixed_abs, tag = 'smem constant byte address 0x4 - core index']
  #allocation1 [shape = 'u32[144,128]{1,0:T(1,128)}', space=vmem, size = 0x12000, scoped, tag = 'internal scratch']
  %s0 = inlined_call_operand.hbm [shape: f32[8,256], index: 0, kind: input, shape index: {}, may-alias: {0,1}]
  %s1 = inlined_call_operand.hbm [shape: f32[8,256], index: 1, kind: output, shape index: {}, may-alias: {0,1}]
  %s2 = sld [smem:[#allocation0]]
  $region18: #{tpu_custom_call.1} parent=0
    _
  %s4 = ssub.s32 1, %s2
  %s5 = scalar_select 0, %s4, %s2
  $region1: #{tpu_custom_call.1} parent=0
    #allocation2 [shape = 'u8[8192]{0}', space=vmem, size = 0x2000, scoped, tag = 'input window, operand 0, single buffered']
    #allocation3 [shape = 's32[1]{0}', space=sflag, size = 0x4, scoped, tag = 'scoped memory for tpu_custom_call.1']
    #allocation4 [shape = 's32[1]{0}', space=sflag, size = 0x4, scoped, tag = 'scoped memory for tpu_custom_call.1']
    #allocation5 [shape = 'u8[8192]{0}', space=vmem, size = 0x2000, scoped, tag = 'output window, operand 0, single buffered']
    %6 = vsyncpa [#allocation3], 0
    %7 = vsyncpa [#allocation4], 0
    // Predicated region
    $region2: #{tpu_custom_call.1} parent=1 // pred_check
      _
    $region3: #{tpu_custom_call.1} parent=1 // pred_check_branch
      %9 = sbr.rel (0) target = $region5
    $region4: #{tpu_custom_call.1} parent=1 // pred_region
      %s11 = ssub.s32 256, 256
      %12 = vsyncadd [#allocation3], %s11
      %s14 = sshll.u32 [#allocation2], 4
      %s15 = int_to_ptr.vmem [resolvable:$true] %s14
      %17 = dma.hbm_to_vmem [thread:$0]  %s0, 256, %s15, [#allocation3]
    $region5: #{tpu_custom_call.1} parent=1 // pred_fallthru
      _
    // Predicated region
    $region6: #{tpu_custom_call.1} parent=1 // pred_check
      _
    $region7: #{tpu_custom_call.1} parent=1 // pred_check_branch
      %19 = sbr.rel (0) target = $region9
    $region8: #{tpu_custom_call.1} parent=1 // pred_region
      %20 = dma.done [#allocation3], 256
    $region9: #{tpu_custom_call.1} parent=1 // pred_fallthru
      _
    %v21 = vld [vmem:[#allocation2] sm:$0xff]
    %v22 = vld [vmem:[#allocation2 + $0x8] sm:$0xff]
    %23 = vst [vmem:[#allocation5] sm:$0xff] %v21
    %24 = vst [vmem:[#allocation5 + $0x8] sm:$0xff] %v22
    // Predicated region
    $region10: #{tpu_custom_call.1} parent=1 // pred_check
      _
    $region11: #{tpu_custom_call.1} parent=1 // pred_check_branch
      %26 = sbr.rel (0) target = $region13
    $region12: #{tpu_custom_call.1} parent=1 // pred_region
      %s28 = ssub.s32 256, 256
      %29 = vsyncadd [#allocation4], %s28
      %s31 = sshll.u32 [#allocation5], 4
      %s32 = int_to_ptr.vmem [resolvable:$true] %s31
      %34 = dma.vmem_to_hbm [thread:$0]  %s32, 256, %s1, [#allocation4]
    $region13: #{tpu_custom_call.1} parent=1 // pred_fallthru
      _
    // Predicated region
    $region14: #{tpu_custom_call.1} parent=1 // pred_check
      _
    $region15: #{tpu_custom_call.1} parent=1 // pred_check_branch
      %36 = sbr.rel (0) target = $region17
    $region16: #{tpu_custom_call.1} parent=1 // pred_region
      %37 = dma.done [#allocation4], 256
    $region17: #{tpu_custom_call.1} parent=1 // pred_fallthru
      _
    %38 = vsyncpa [#allocation3], 1
    %39 = vsyncpa [#allocation4], 1

</llo_original>
